<compile_context>
chip_gen: v6e
topology: v6e:2x2x1
jax: 0.10.0
libtpu: 0.0.40
codegen_flags: <defaults>
</compile_context>

<pallas_src>
import jax
import jax.numpy as jnp
from jax.experimental import pallas as pl
from jax.experimental.pallas import tpu as pltpu


def mlp_kernel(x_ref, w1_ref, b1_ref, w2_ref, b2_ref, w3_ref, b3_ref, o_ref):
    # fc1 + ReLU  (K padded to 256, zero rows of w1 contribute nothing)
    h1 = jnp.dot(x_ref[...], w1_ref[...], preferred_element_type=jnp.float32)
    h1 = jnp.maximum(h1 + b1_ref[...], 0.0)
    # fc2 + ReLU
    h2 = jnp.dot(h1, w2_ref[...], preferred_element_type=jnp.float32)
    h2 = jnp.maximum(h2 + b2_ref[...], 0.0)
    # fc3 (output padded to 128 lanes -> unmasked, lane-dense stores)
    h3 = jnp.dot(h2, w3_ref[...], preferred_element_type=jnp.float32)
    o_ref[...] = (h3 + b3_ref[...]).astype(o_ref.dtype)


def mlp_forward(x, w1, b1, w2, b2, w3, b3, *, tb=None):
    """x: (B, 197) f32. Returns (B, 3) f32, identical semantics to the PyTorch module."""
    B, K = x.shape
    H1 = w1.shape[1]          # 64
    H2 = w2.shape[1]          # 32
    OUT = w3.shape[1]         # 3
    K_PAD = 256               # 197 -> 256 (lane-aligned contraction)
    OUT_PAD = 128             # 3   -> 128 (lane-dense output stores)

    # Batch tile: large enough to amortize per-step overhead, multiple of 8
    # (sublane) so the (8,128) BlockSpec constraint holds. Small batches get a
    # single tile. TB=512 f32 x-tile is ~0.5 MiB -> trivially fits VMEM even
    # with double buffering on v7x's 64 MiB parts.
    if tb is None:
        tb = 512 if B >= 512 else ((B + 7) // 8) * 8
    B_pad = ((B + tb - 1) // tb) * tb

    # Zero-pad: extra x columns / w1 rows / w3 columns are zero, so the math
    # is unchanged; padded output columns are sliced off below.
    x_p = jnp.zeros((B_pad, K_PAD), jnp.float32).at[:B, :K].set(x)
    w1_p = jnp.zeros((K_PAD, H1), jnp.float32).at[:K, :].set(w1)
    w3_p = jnp.zeros((H2, OUT_PAD), jnp.float32).at[:, :OUT].set(w3)
    b3_p = jnp.zeros((1, OUT_PAD), jnp.float32).at[:, :OUT].set(b3)

    grid = (B_pad // tb,)

    flops = 2 * B_pad * (K_PAD * H1 + H1 * H2 + H2 * OUT_PAD)
    weight_bytes = 4 * (K_PAD * H1 + H1 + H1 * H2 + H2 + H2 * OUT_PAD + OUT_PAD)
    bytes_accessed = 4 * (B_pad * K_PAD + B_pad * OUT_PAD) + weight_bytes
    cost = pl.CostEstimate(
        flops=flops, transcendentals=0, bytes_accessed=bytes_accessed
    )

    out_p = pl.pallas_call(
        mlp_kernel,
        out_shape=jax.ShapeDtypeStruct((B_pad, OUT_PAD), jnp.float32),
        grid_spec=pltpu.PrefetchScalarGridSpec(
            num_scalar_prefetch=0,
            grid=grid,
            in_specs=[
                # x streams over the batch grid (double-buffered by Pallas).
                pl.BlockSpec((tb, K_PAD), lambda i: (i, 0)),
                # Weights/biases: grid-invariant blocks -> loaded once, resident.
                pl.BlockSpec((K_PAD, H1), lambda i: (0, 0)),
                pl.BlockSpec((1, H1), lambda i: (0, 0)),
                pl.BlockSpec((H1, H2), lambda i: (0, 0)),
                pl.BlockSpec((1, H2), lambda i: (0, 0)),
                pl.BlockSpec((H2, OUT_PAD), lambda i: (0, 0)),
                pl.BlockSpec((1, OUT_PAD), lambda i: (0, 0)),
            ],
            out_specs=pl.BlockSpec((tb, OUT_PAD), lambda i: (i, 0)),
        ),
        compiler_params=pltpu.CompilerParams(
            # Batch axis is independent -> shard across TensorCores on v7x.
            dimension_semantics=("parallel",),
        ),
        cost_estimate=cost,
    )(x_p, w1_p, b1, w2, b2, w3_p, b3_p)

    return out_p[:B, :OUT]


def init_params(key):
    # Deterministic init mimicking nn.Linear's uniform(-1/sqrt(fan_in), 1/sqrt(fan_in)).
    dims = [(197, 64), (64, 32), (32, 3)]
    params = []
    for i, (fan_in, fan_out) in enumerate(dims):
        kw, kb = jax.random.split(jax.random.fold_in(key, i))
        bound = 1.0 / jnp.sqrt(jnp.float32(fan_in))
        w = jax.random.uniform(kw, (fan_in, fan_out), jnp.float32, -bound, bound)
        b = jax.random.uniform(kb, (1, fan_out), jnp.float32, -bound, bound)
        params.extend([w, b])
    return params


if __name__ == "__main__":
    key = jax.random.PRNGKey(0)
    kx, kp = jax.random.split(key)

    batch = 8
    x = jax.random.normal(kx, (batch, 197), dtype=jnp.float32)
    w1, b1, w2, b2, w3, b3 = init_params(kp)

    out = mlp_forward(x, w1, b1, w2, b2, w3, b3)
    out = jax.block_until_ready(out)

    # Reference check in plain JAX (unpadded math).
    ref = jnp.maximum(x @ w1 + b1, 0.0)
    ref = jnp.maximum(ref @ w2 + b2, 0.0)
    ref = ref @ w3 + b3
    assert out.shape == (batch, 3)
    assert jnp.allclose(out, ref, atol=1e-5, rtol=1e-5)

    print("KERNEL_OK")
</pallas_src>

<mosaic_0001>
module attributes {stable_mosaic.version = 11 : i64} {
  func.func @mlp_kernel(%arg0: i32, %arg1: memref<8x256xf32, #tpu.memory_space<vmem>>, %arg2: memref<256x64xf32, #tpu.memory_space<vmem>>, %arg3: memref<1x64xf32, #tpu.memory_space<vmem>>, %arg4: memref<64x32xf32, #tpu.memory_space<vmem>>, %arg5: memref<1x32xf32, #tpu.memory_space<vmem>>, %arg6: memref<32x128xf32, #tpu.memory_space<vmem>>, %arg7: memref<1x128xf32, #tpu.memory_space<vmem>>, %arg8: memref<8x128xf32, #tpu.memory_space<vmem>>) attributes {dimension_semantics = [#tpu.dimension_semantics<parallel>], iteration_bounds = array<i64: 1>, scalar_prefetch = 0 : i64, scratch_operands = 0 : i64, tpu.core_type = #tpu.core_type<tc>, window_params = [{transform_indices = @transform_0, window_bounds = array<i64: 8, 256>}, {pipeline_mode = #tpu.pipeline_mode<synchronous>, transform_indices = @transform_1, window_bounds = array<i64: 256, 64>}, {pipeline_mode = #tpu.pipeline_mode<synchronous>, transform_indices = @transform_2, window_bounds = array<i64: 1, 64>}, {pipeline_mode = #tpu.pipeline_mode<synchronous>, transform_indices = @transform_3, window_bounds = array<i64: 64, 32>}, {pipeline_mode = #tpu.pipeline_mode<synchronous>, transform_indices = @transform_4, window_bounds = array<i64: 1, 32>}, {pipeline_mode = #tpu.pipeline_mode<synchronous>, transform_indices = @transform_5, window_bounds = array<i64: 32, 128>}, {pipeline_mode = #tpu.pipeline_mode<synchronous>, transform_indices = @transform_6, window_bounds = array<i64: 1, 128>}, {transform_indices = @transform_7, window_bounds = array<i64: 8, 128>}]} {
    %c0 = arith.constant 0 : index
    %c0_0 = arith.constant 0 : index
    %0 = vector.load %arg1[%c0, %c0_0] : memref<8x256xf32, #tpu.memory_space<vmem>>, vector<8x256xf32>
    %c0_1 = arith.constant 0 : index
    %c0_2 = arith.constant 0 : index
    %1 = vector.load %arg2[%c0_1, %c0_2] : memref<256x64xf32, #tpu.memory_space<vmem>>, vector<256x64xf32>
    %cst = arith.constant dense<0.000000e+00> : vector<8x64xf32>
    %2 = tpu.matmul %0, %1, %cst {dimension_numbers = #tpu.dot_dimension_numbers<[1], [0], [0], [1], [0, 0, 1, 1], [], []>} : vector<8x256xf32>, vector<256x64xf32>, vector<8x64xf32> -> vector<8x64xf32>
    %c0_3 = arith.constant 0 : index
    %c0_4 = arith.constant 0 : index
    %3 = vector.load %arg3[%c0_3, %c0_4] : memref<1x64xf32, #tpu.memory_space<vmem>>, vector<1x64xf32>
    %4 = vector.broadcast %3 : vector<1x64xf32> to vector<8x64xf32>
    %5 = arith.addf %2, %4 : vector<8x64xf32>
    %cst_5 = arith.constant 0.000000e+00 : f32
    %6 = vector.broadcast %cst_5 : f32 to vector<8x64xf32>
    %7 = arith.maximumf %5, %6 : vector<8x64xf32>
    %c0_6 = arith.constant 0 : index
    %c0_7 = arith.constant 0 : index
    %8 = vector.load %arg4[%c0_6, %c0_7] : memref<64x32xf32, #tpu.memory_space<vmem>>, vector<64x32xf32>
    %cst_8 = arith.constant dense<0.000000e+00> : vector<8x32xf32>
    %9 = tpu.matmul %7, %8, %cst_8 {dimension_numbers = #tpu.dot_dimension_numbers<[1], [0], [0], [1], [0, 0, 1, 1], [], []>} : vector<8x64xf32>, vector<64x32xf32>, vector<8x32xf32> -> vector<8x32xf32>
    %c0_9 = arith.constant 0 : index
    %c0_10 = arith.constant 0 : index
    %10 = vector.load %arg5[%c0_9, %c0_10] : memref<1x32xf32, #tpu.memory_space<vmem>>, vector<1x32xf32>
    %11 = vector.broadcast %10 : vector<1x32xf32> to vector<8x32xf32>
    %12 = arith.addf %9, %11 : vector<8x32xf32>
    %cst_11 = arith.constant 0.000000e+00 : f32
    %13 = vector.broadcast %cst_11 : f32 to vector<8x32xf32>
    %14 = arith.maximumf %12, %13 : vector<8x32xf32>
    %c0_12 = arith.constant 0 : index
    %c0_13 = arith.constant 0 : index
    %15 = vector.load %arg6[%c0_12, %c0_13] : memref<32x128xf32, #tpu.memory_space<vmem>>, vector<32x128xf32>
    %cst_14 = arith.constant dense<0.000000e+00> : vector<8x128xf32>
    %16 = tpu.matmul %14, %15, %cst_14 {dimension_numbers = #tpu.dot_dimension_numbers<[1], [0], [0], [1], [0, 0, 1, 1], [], []>} : vector<8x32xf32>, vector<32x128xf32>, vector<8x128xf32> -> vector<8x128xf32>
    %c0_15 = arith.constant 0 : index
    %c0_16 = arith.constant 0 : index
    %17 = vector.load %arg7[%c0_15, %c0_16] : memref<1x128xf32, #tpu.memory_space<vmem>>, vector<1x128xf32>
    %18 = vector.broadcast %17 : vector<1x128xf32> to vector<8x128xf32>
    %19 = arith.addf %16, %18 : vector<8x128xf32>
    %c0_17 = arith.constant 0 : index
    %c0_18 = arith.constant 0 : index
    %20 = vector.load %arg8[%c0_17, %c0_18] : memref<8x128xf32, #tpu.memory_space<vmem>>, vector<8x128xf32>
    tpu.vector_store %arg8[%c0_17, %c0_18], %19 {strides = array<i32>} : memref<8x128xf32, #tpu.memory_space<vmem>>, vector<8x128xf32>,
    return
  }
  func.func @transform_0(%arg0: i32) -> (i32, i32) {
    %c0_i32 = arith.constant 0 : i32
    %c0_i32_0 = arith.constant 0 : i32
    return %arg0, %c0_i32 : i32, i32
  }
  func.func @transform_1(%arg0: i32) -> (i32, i32) {
    %c0_i32 = arith.constant 0 : i32
    %c0_i32_0 = arith.constant 0 : i32
    %c0_i32_1 = arith.constant 0 : i32
    return %c0_i32, %c0_i32_0 : i32, i32
  }
  func.func @transform_2(%arg0: i32) -> (i32, i32) {
    %c0_i32 = arith.constant 0 : i32
    %c0_i32_0 = arith.constant 0 : i32
    %c0_i32_1 = arith.constant 0 : i32
    return %c0_i32, %c0_i32_0 : i32, i32
  }
  func.func @transform_3(%arg0: i32) -> (i32, i32) {
    %c0_i32 = arith.constant 0 : i32
    %c0_i32_0 = arith.constant 0 : i32
    %c0_i32_1 = arith.constant 0 : i32
    return %c0_i32, %c0_i32_0 : i32, i32
  }
  func.func @transform_4(%arg0: i32) -> (i32, i32) {
    %c0_i32 = arith.constant 0 : i32
    %c0_i32_0 = arith.constant 0 : i32
    %c0_i32_1 = arith.constant 0 : i32
    return %c0_i32, %c0_i32_0 : i32, i32
  }
  func.func @transform_5(%arg0: i32) -> (i32, i32) {
    %c0_i32 = arith.constant 0 : i32
    %c0_i32_0 = arith.constant 0 : i32
    %c0_i32_1 = arith.constant 0 : i32
    return %c0_i32, %c0_i32_0 : i32, i32
  }
  func.func @transform_6(%arg0: i32) -> (i32, i32) {
    %c0_i32 = arith.constant 0 : i32
    %c0_i32_0 = arith.constant 0 : i32
    %c0_i32_1 = arith.constant 0 : i32
    return %c0_i32, %c0_i32_0 : i32, i32
  }
  func.func @transform_7(%arg0: i32) -> (i32, i32) {
    %c0_i32 = arith.constant 0 : i32
    %c0_i32_0 = arith.constant 0 : i32
    return %arg0, %c0_i32 : i32, i32
  }
}

</mosaic_0001>

<llo_original>
// kernel: tpu_custom_call.1
$region0: #{tpu_custom_call.1}
  #allocation0 [shape = 'u32[]', space=smem, size = 0x4, offset = 0x4, fixed_abs, tag = 'smem constant byte address 0x4 - core index']
  #allocation1 [shape = 'u32[144,128]{1,0:T(1,128)}', space=vmem, size = 0x12000, scoped, tag = 'internal scratch']
  %s0 = inlined_call_operand.vmem [shape: f32[8,256], index: 0, kind: input, shape index: {}]
  %s1 = inlined_call_operand.vmem [shape: f32[256,64], index: 1, kind: input, shape index: {}]
  %s2 = inlined_call_operand.vmem [shape: f32[1,64], index: 2, kind: input, shape index: {}]
  %s3 = inlined_call_operand.vmem [shape: f32[64,32], index: 3, kind: input, shape index: {}]
  %s4 = inlined_call_operand.vmem [shape: f32[1,32], index: 4, kind: input, shape index: {}]
  %s5 = inlined_call_operand.vmem [shape: f32[32,128], index: 5, kind: input, shape index: {}]
  %s6 = inlined_call_operand.vmem [shape: f32[1,128], index: 6, kind: input, shape index: {}]
  %s7 = inlined_call_operand.hbm [shape: f32[8,128], index: 7, kind: output, shape index: {}]
  %s8 = sld [smem:[#allocation0]]
  $region38: #{tpu_custom_call.1} parent=0
    _
  %s10 = ssub.s32 1, %s8
  %s11 = scalar_select 0, %s10, %s8
  $region1: #{tpu_custom_call.1} parent=0
    #allocation2 [shape = 'u8[4096]{0}', space=vmem, size = 0x1000, scoped, tag = 'output window, operand 0, single buffered']
    #allocation3 [shape = 's32[1]{0}', space=sflag, size = 0x4, scoped, tag = 'scoped memory for tpu_custom_call.1']
    %12 = vsyncpa [#allocation3], 0
    // Predicated region
    $region2: #{tpu_custom_call.1} parent=1 // pred_check
      _
    $region3: #{tpu_custom_call.1} parent=1 // pred_check_branch
      %14 = sbr.rel (0) target = $region5
    $region4: #{tpu_custom_call.1} parent=1 // pred_region
      _
    $region5: #{tpu_custom_call.1} parent=1 // pred_fallthru
      _
    // Predicated region
    $region6: #{tpu_custom_call.1} parent=1 // pred_check
      _
    $region7: #{tpu_custom_call.1} parent=1 // pred_check_branch
      %16 = sbr.rel (0) target = $region9
    $region8: #{tpu_custom_call.1} parent=1 // pred_region
      _
    $region9: #{tpu_custom_call.1} parent=1 // pred_fallthru
      _
    // Predicated region
    $region10: #{tpu_custom_call.1} parent=1 // pred_check
      _
    $region11: #{tpu_custom_call.1} parent=1 // pred_check_branch
      %18 = sbr.rel (0) target = $region13
    $region12: #{tpu_custom_call.1} parent=1 // pred_region
      _
    $region13: #{tpu_custom_call.1} parent=1 // pred_fallthru
      _
    // Predicated region
    $region14: #{tpu_custom_call.1} parent=1 // pred_check
      _
    $region15: #{tpu_custom_call.1} parent=1 // pred_check_branch
      %20 = sbr.rel (0) target = $region17
    $region16: #{tpu_custom_call.1} parent=1 // pred_region
      _
    $region17: #{tpu_custom_call.1} parent=1 // pred_fallthru
      _
    // Predicated region
    $region18: #{tpu_custom_call.1} parent=1 // pred_check
      _
    $region19: #{tpu_custom_call.1} parent=1 // pred_check_branch
      %22 = sbr.rel (0) target = $region21
    $region20: #{tpu_custom_call.1} parent=1 // pred_region
      _
    $region21: #{tpu_custom_call.1} parent=1 // pred_fallthru
      _
    // Predicated region
    $region22: #{tpu_custom_call.1} parent=1 // pred_check
      _
    $region23: #{tpu_custom_call.1} parent=1 // pred_check_branch
      %24 = sbr.rel (0) target = $region25
    $region24: #{tpu_custom_call.1} parent=1 // pred_region
      _
    $region25: #{tpu_custom_call.1} parent=1 // pred_fallthru
      _
    // Predicated region
    $region26: #{tpu_custom_call.1} parent=1 // pred_check
      _
    $region27: #{tpu_custom_call.1} parent=1 // pred_check_branch
      %26 = sbr.rel (0) target = $region29
    $region28: #{tpu_custom_call.1} parent=1 // pred_region
      _
    $region29: #{tpu_custom_call.1} parent=1 // pred_fallthru
      _
    %v27 = vld [vmem:[%s0] sm:$0xff]
    %v28 = vld [vmem:[%s0 + $0x8] sm:$0xff]
    %v29 = vld [vmem:[%s1] sm:$0xff]
    %v30 = vld [vmem:[%s1 + $0x8] sm:$0xff]
    %v31 = vld [vmem:[%s1 + $0x10] sm:$0xff]
    %v32 = vld [vmem:[%s1 + $0x18] sm:$0xff]
    %v33 = vld [vmem:[%s1 + $0x20] sm:$0xff]
    %v34 = vld [vmem:[%s1 + $0x28] sm:$0xff]
    %v35 = vld [vmem:[%s1 + $0x30] sm:$0xff]
    %v36 = vld [vmem:[%s1 + $0x38] sm:$0xff]
    %v37 = vld [vmem:[%s1 + $0x40] sm:$0xff]
    %v38 = vld [vmem:[%s1 + $0x48] sm:$0xff]
    %v39 = vld [vmem:[%s1 + $0x50] sm:$0xff]
    %v40 = vld [vmem:[%s1 + $0x58] sm:$0xff]
    %v41 = vld [vmem:[%s1 + $0x60] sm:$0xff]
    %v42 = vld [vmem:[%s1 + $0x68] sm:$0xff]
    %v43 = vld [vmem:[%s1 + $0x70] sm:$0xff]
    %v44 = vld [vmem:[%s1 + $0x78] sm:$0xff]
    %v45 = vld [vmem:[%s1 + $0x80] sm:$0xff]
    %v46 = vld [vmem:[%s1 + $0x88] sm:$0xff]
    %v47 = vld [vmem:[%s1 + $0x90] sm:$0xff]
    %v48 = vld [vmem:[%s1 + $0x98] sm:$0xff]
    %v49 = vld [vmem:[%s1 + $0xa0] sm:$0xff]
    %v50 = vld [vmem:[%s1 + $0xa8] sm:$0xff]
    %v51 = vld [vmem:[%s1 + $0xb0] sm:$0xff]
    %v52 = vld [vmem:[%s1 + $0xb8] sm:$0xff]
    %v53 = vld [vmem:[%s1 + $0xc0] sm:$0xff]
    %v54 = vld [vmem:[%s1 + $0xc8] sm:$0xff]
    %v55 = vld [vmem:[%s1 + $0xd0] sm:$0xff]
    %v56 = vld [vmem:[%s1 + $0xd8] sm:$0xff]
    %v57 = vld [vmem:[%s1 + $0xe0] sm:$0xff]
    %v58 = vld [vmem:[%s1 + $0xe8] sm:$0xff]
    %v59 = vld [vmem:[%s1 + $0xf0] sm:$0xff]
    %v60 = vld [vmem:[%s1 + $0xf8] sm:$0xff]
    %v61 = vld [vmem:[%s2] sm:$0x1]
    %v63 = vlaneseq
    %v64 = vshrl.u32 %v63, 7
    %v65 = vsub.s32 0, %v64
    %v66 = vrot.slane %v61, %v65
    %68 = vmatprep.subr.mxu0 0.0
    %69 = vmatpush1.msra.mxu0 %v44
    %70 = vmatprep.subr.mxu0 0.0
    %71 = vmatpush1.msra.mxu0 %v43
    %72 = vmatprep.subr.mxu0 0.0
    %73 = vmatpush1.msra.mxu0 %v42
    %74 = vmatprep.subr.mxu0 0.0
    %75 = vmatpush1.msra.mxu0 %v41
    %76 = vmatprep.subr.mxu0 0.0
    %77 = vmatpush1.msra.mxu0 %v40
    %78 = vmatprep.subr.mxu0 0.0
    %79 = vmatpush1.msra.mxu0 %v39
    %80 = vmatprep.subr.mxu0 0.0
    %81 = vmatpush1.msra.mxu0 %v38
    %82 = vmatprep.subr.mxu0 0.0
    %83 = vmatpush1.msra.mxu0 %v37
    %84 = vmatprep.subr.mxu0 0.0
    %85 = vmatpush1.msra.mxu0 %v36
    %86 = vmatprep.subr.mxu0 0.0
    %87 = vmatpush1.msra.mxu0 %v35
    %88 = vmatprep.subr.mxu0 0.0
    %89 = vmatpush1.msra.mxu0 %v34
    %90 = vmatprep.subr.mxu0 0.0
    %91 = vmatpush1.msra.mxu0 %v33
    %92 = vmatprep.subr.mxu0 0.0
    %93 = vmatpush1.msra.mxu0 %v32
    %94 = vmatprep.subr.mxu0 0.0
    %95 = vmatpush1.msra.mxu0 %v31
    %96 = vmatprep.subr.mxu0 0.0
    %97 = vmatpush1.msra.mxu0 %v30
    %98 = vmatprep.subr.mxu0 0.0
    %99 = vmatpush1.msra.mxu0 %v29
    %100 = vmatprep.subr.mxu0 0.0
    %101 = vmatpush2.msra.mxu0 %v60
    %102 = vmatprep.subr.mxu0 0.0
    %103 = vmatpush2.msra.mxu0 %v59
    %104 = vmatprep.subr.mxu0 0.0
    %105 = vmatpush2.msra.mxu0 %v58
    %106 = vmatprep.subr.mxu0 0.0
    %107 = vmatpush2.msra.mxu0 %v57
    %108 = vmatprep.subr.mxu0 0.0
    %109 = vmatpush2.msra.mxu0 %v56
    %110 = vmatprep.subr.mxu0 0.0
    %111 = vmatpush2.msra.mxu0 %v55
    %112 = vmatprep.subr.mxu0 0.0
    %113 = vmatpush2.msra.mxu0 %v54
    %114 = vmatprep.subr.mxu0 0.0
    %115 = vmatpush2.msra.mxu0 %v53
    %116 = vmatprep.subr.mxu0 0.0
    %117 = vmatpush2.msra.mxu0 %v52
    %118 = vmatprep.subr.mxu0 0.0
    %119 = vmatpush2.msra.mxu0 %v51
    %120 = vmatprep.subr.mxu0 0.0
    %121 = vmatpush2.msra.mxu0 %v50
    %122 = vmatprep.subr.mxu0 0.0
    %123 = vmatpush2.msra.mxu0 %v49
    %124 = vmatprep.subr.mxu0 0.0
    %125 = vmatpush2.msra.mxu0 %v48
    %126 = vmatprep.subr.mxu0 0.0
    %127 = vmatpush2.msra.mxu0 %v47
    %128 = vmatprep.subr.mxu0 0.0
    %129 = vmatpush2.msra.mxu0 %v46
    %130 = vmatprep.subr.mxu0 0.0
    %131 = vmatpush2.msra.mxu0 %v45
    %132 = vmatprep.mubr.f32.mxu0 %v28
    %133 = vmatmul.mubr.f32.gmra.mxu0 %v27
    %v134 = vpop.f32.mrf.mxu0
    %v135 = vadd.f32 %v66, %v134
    %v136 = vpop.f32.mrf.mxu0
    %137 = vdwg.mxu0
    %v138 = vmax.f32 %v135, 0.0
    %v139 = vld [vmem:[%s3] sm:$0xff]
    %v140 = vld [vmem:[%s3 + $0x8] sm:$0xff]
    %v141 = vld [vmem:[%s3 + $0x10] sm:$0xff]
    %v142 = vld [vmem:[%s3 + $0x18] sm:$0xff]
    %v143 = vld [vmem:[%s3 + $0x20] sm:$0xff]
    %v144 = vld [vmem:[%s3 + $0x28] sm:$0xff]
    %v145 = vld [vmem:[%s3 + $0x30] sm:$0xff]
    %v146 = vld [vmem:[%s3 + $0x38] sm:$0xff]
    %v147 = vld [vmem:[%s4] sm:$0x1]
    %v149 = vlaneseq
    %v150 = vshrl.u32 %v149, 7
    %v151 = vsub.s32 0, %v150
    %v152 = vrot.slane %v147, %v151
    %vm154 = vcmask 523264
    %v156 = vsel %vm154, %v138, 0
    %158 = vmatprep.subr.mxu0 0.0
    %159 = vmatpush1.msra.mxu0 0.0
    %160 = vmatprep.subr.mxu0 0.0
    %161 = vmatpush1.msra.mxu0 0.0
    %162 = vmatprep.subr.mxu0 0.0
    %163 = vmatpush1.msra.mxu0 0.0
    %164 = vmatprep.subr.mxu0 0.0
    %165 = vmatpush1.msra.mxu0 0.0
    %166 = vmatprep.subr.mxu0 0.0
    %167 = vmatpush1.msra.mxu0 0.0
    %168 = vmatprep.subr.mxu0 0.0
    %169 = vmatpush1.msra.mxu0 0.0
    %170 = vmatprep.subr.mxu0 0.0
    %171 = vmatpush1.msra.mxu0 0.0
    %172 = vmatprep.subr.mxu0 0.0
    %173 = vmatpush1.msra.mxu0 0.0
    %174 = vmatprep.subr.mxu0 0.0
    %175 = vmatpush1.msra.mxu0 %v146
    %176 = vmatprep.subr.mxu0 0.0
    %177 = vmatpush1.msra.mxu0 %v145
    %178 = vmatprep.subr.mxu0 0.0
    %179 = vmatpush1.msra.mxu0 %v144
    %180 = vmatprep.subr.mxu0 0.0
    %181 = vmatpush1.msra.mxu0 %v143
    %182 = vmatprep.subr.mxu0 0.0
    %183 = vmatpush1.msra.mxu0 %v142
    %184 = vmatprep.subr.mxu0 0.0
    %185 = vmatpush1.msra.mxu0 %v141
    %186 = vmatprep.subr.mxu0 0.0
    %187 = vmatpush1.msra.mxu0 %v140
    %188 = vmatprep.subr.mxu0 0.0
    %189 = vmatpush1.msra.mxu0 %v139
    %190 = vmatprep.subr.mxu0 0.0
    %191 = vmatpush2.msra.mxu0 0.0
    %192 = vmatprep.subr.mxu0 0.0
    %193 = vmatpush2.msra.mxu0 0.0
    %194 = vmatprep.subr.mxu0 0.0
    %195 = vmatpush2.msra.mxu0 0.0
    %196 = vmatprep.subr.mxu0 0.0
    %197 = vmatpush2.msra.mxu0 0.0
    %198 = vmatprep.subr.mxu0 0.0
    %199 = vmatpush2.msra.mxu0 0.0
    %200 = vmatprep.subr.mxu0 0.0
    %201 = vmatpush2.msra.mxu0 0.0
    %202 = vmatprep.subr.mxu0 0.0
    %203 = vmatpush2.msra.mxu0 0.0
    %204 = vmatprep.subr.mxu0 0.0
    %205 = vmatpush2.msra.mxu0 0.0
    %206 = vmatprep.subr.mxu0 0.0
    %207 = vmatpush2.msra.mxu0 0.0
    %208 = vmatprep.subr.mxu0 0.0
    %209 = vmatpush2.msra.mxu0 0.0
    %210 = vmatprep.subr.mxu0 0.0
    %211 = vmatpush2.msra.mxu0 0.0
    %212 = vmatprep.subr.mxu0 0.0
    %213 = vmatpush2.msra.mxu0 0.0
    %214 = vmatprep.subr.mxu0 0.0
    %215 = vmatpush2.msra.mxu0 0.0
    %216 = vmatprep.subr.mxu0 0.0
    %217 = vmatpush2.msra.mxu0 0.0
    %218 = vmatprep.subr.mxu0 0.0
    %219 = vmatpush2.msra.mxu0 0.0
    %220 = vmatprep.subr.mxu0 0.0
    %221 = vmatpush2.msra.mxu0 0.0
    %222 = vmatprep.mubr.f32.mxu0 0.0
    %223 = vmatmul.mubr.f32.gmra.mxu0 %v156
    %v224 = vpop.f32.mrf.mxu0
    %v225 = vadd.f32 %v152, %v224
    %v226 = vpop.f32.mrf.mxu0
    %227 = vdwg.mxu0
    %v228 = vmax.f32 %v225, 0.0
    %v229 = vld [vmem:[%s5] sm:$0xff]
    %v230 = vld [vmem:[%s5 + $0x8] sm:$0xff]
    %v231 = vld [vmem:[%s5 + $0x10] sm:$0xff]
    %v232 = vld [vmem:[%s5 + $0x18] sm:$0xff]
    %v233 = vld [vmem:[%s6] sm:$0x1]
    %v235 = vlaneseq
    %v236 = vshrl.u32 %v235, 7
    %v237 = vsub.s32 0, %v236
    %v238 = vrot.slane %v233, %v237
    %vm240 = vcmask 261120
    %v242 = vsel %vm240, %v228, 0
    %244 = vmatprep.subr.mxu0 0.0
    %245 = vmatpush1.msra.mxu0 0.0
    %246 = vmatprep.subr.mxu0 0.0
    %247 = vmatpush1.msra.mxu0 0.0
    %248 = vmatprep.subr.mxu0 0.0
    %249 = vmatpush1.msra.mxu0 0.0
    %250 = vmatprep.subr.mxu0 0.0
    %251 = vmatpush1.msra.mxu0 0.0
    %252 = vmatprep.subr.mxu0 0.0
    %253 = vmatpush1.msra.mxu0 0.0
    %254 = vmatprep.subr.mxu0 0.0
    %255 = vmatpush1.msra.mxu0 0.0
    %256 = vmatprep.subr.mxu0 0.0
    %257 = vmatpush1.msra.mxu0 0.0
    %258 = vmatprep.subr.mxu0 0.0
    %259 = vmatpush1.msra.mxu0 0.0
    %260 = vmatprep.subr.mxu0 0.0
    %261 = vmatpush1.msra.mxu0 0.0
    %262 = vmatprep.subr.mxu0 0.0
    %263 = vmatpush1.msra.mxu0 0.0
    %264 = vmatprep.subr.mxu0 0.0
    %265 = vmatpush1.msra.mxu0 0.0
    %266 = vmatprep.subr.mxu0 0.0
    %267 = vmatpush1.msra.mxu0 0.0
    %268 = vmatprep.subr.mxu0 0.0
    %269 = vmatpush1.msra.mxu0 %v232
    %270 = vmatprep.subr.mxu0 0.0
    %271 = vmatpush1.msra.mxu0 %v231
    %272 = vmatprep.subr.mxu0 0.0
    %273 = vmatpush1.msra.mxu0 %v230
    %274 = vmatprep.subr.mxu0 0.0
    %275 = vmatpush1.msra.mxu0 %v229
    %276 = vmatprep.subr.mxu0 0.0
    %277 = vmatpush2.msra.mxu0 0.0
    %278 = vmatprep.subr.mxu0 0.0
    %279 = vmatpush2.msra.mxu0 0.0
    %280 = vmatprep.subr.mxu0 0.0
    %281 = vmatpush2.msra.mxu0 0.0
    %282 = vmatprep.subr.mxu0 0.0
    %283 = vmatpush2.msra.mxu0 0.0
    %284 = vmatprep.subr.mxu0 0.0
    %285 = vmatpush2.msra.mxu0 0.0
    %286 = vmatprep.subr.mxu0 0.0
    %287 = vmatpush2.msra.mxu0 0.0
    %288 = vmatprep.subr.mxu0 0.0
    %289 = vmatpush2.msra.mxu0 0.0
    %290 = vmatprep.subr.mxu0 0.0
    %291 = vmatpush2.msra.mxu0 0.0
    %292 = vmatprep.subr.mxu0 0.0
    %293 = vmatpush2.msra.mxu0 0.0
    %294 = vmatprep.subr.mxu0 0.0
    %295 = vmatpush2.msra.mxu0 0.0
    %296 = vmatprep.subr.mxu0 0.0
    %297 = vmatpush2.msra.mxu0 0.0
    %298 = vmatprep.subr.mxu0 0.0
    %299 = vmatpush2.msra.mxu0 0.0
    %300 = vmatprep.subr.mxu0 0.0
    %301 = vmatpush2.msra.mxu0 0.0
    %302 = vmatprep.subr.mxu0 0.0
    %303 = vmatpush2.msra.mxu0 0.0
    %304 = vmatprep.subr.mxu0 0.0
    %305 = vmatpush2.msra.mxu0 0.0
    %306 = vmatprep.subr.mxu0 0.0
    %307 = vmatpush2.msra.mxu0 0.0
    %308 = vmatprep.mubr.f32.mxu0 0.0
    %309 = vmatmul.mubr.f32.gmra.mxu0 %v242
    %v310 = vpop.f32.mrf.mxu0
    %v311 = vadd.f32 %v238, %v310
    %v312 = vpop.f32.mrf.mxu0
    %313 = vdwg.mxu0
    %314 = vst [vmem:[#allocation2] sm:$0xff] %v311
    // Predicated region
    $region30: #{tpu_custom_call.1} parent=1 // pred_check
      _
    $region31: #{tpu_custom_call.1} parent=1 // pred_check_branch
      %316 = sbr.rel (0) target = $region33
    $region32: #{tpu_custom_call.1} parent=1 // pred_region
      %s318 = ssub.s32 128, 128
      %319 = vsyncadd [#allocation3], %s318
      %s321 = sshll.u32 [#allocation2], 4
      %s322 = int_to_ptr.vmem [resolvable:$true] %s321
      %324 = dma.vmem_to_hbm [thread:$0]  %s322, 128, %s7, [#allocation3]
    $region33: #{tpu_custom_call.1} parent=1 // pred_fallthru
      _
    // Predicated region
    $region34: #{tpu_custom_call.1} parent=1 // pred_check
      _
    $region35: #{tpu_custom_call.1} parent=1 // pred_check_branch
      %326 = sbr.rel (0) target = $region37
    $region36: #{tpu_custom_call.1} parent=1 // pred_region
      %327 = dma.done [#allocation3], 128
    $region37: #{tpu_custom_call.1} parent=1 // pred_fallthru
      _
    %328 = vsyncpa [#allocation3], 1

</llo_original>
